<compile_context>
chip_gen: v7x
topology: tpu7x:2x2x1
jax: 0.10.0
libtpu: 0.0.40
codegen_flags: <defaults>
</compile_context>

<pallas_src>
import functools

import jax
import jax.numpy as jnp
from jax import lax
from jax.experimental import pallas as pl
from jax.experimental.pallas import tpu as pltpu


def _round_up(x, m):
    return ((x + m - 1) // m) * m


def _attention_kernel(enc_ref, q_ref, w_ref, v_ref, out_ref, *, tanh_bf16):
    # enc_ref : (Bblk, T, D)  encoder_seq_proj tile
    # q_ref   : (Bblk, D)     query tile
    # w_ref   : (D, D)        W weight (PyTorch layout: out x in)
    # v_ref   : (1, D)        v weight (PyTorch layout: out x in)
    # out_ref : (Bblk, T)     softmax attention scores (lane-dense in T)
    enc = enc_ref[...]
    q = q_ref[...]
    w = w_ref[...]
    v = v_ref[...]

    # query_proj = query @ W^T  -> (Bblk, D): one MXU matmul per tile.
    qp = lax.dot_general(q, w, (((1,), (1,)), ((), ())),
                         preferred_element_type=jnp.float32)

    x = enc + qp[:, None, :]
    if tanh_bf16:
        # Optional v6e/v7x path: ~2x EUP tanh rate if the EUP slot is the
        # bottleneck (only relevant on v7x's faster HBM).
        th = jnp.tanh(x.astype(jnp.bfloat16)).astype(jnp.float32)
    else:
        th = jnp.tanh(x)

    # u = sum_D tanh(...) * v  -> (Bblk, T): VPU multiply + XLU lane reduce.
    u = jnp.sum(th * v, axis=-1)

    # Numerically stable softmax over T; exact division (no approx recip).
    m = jnp.max(u, axis=-1, keepdims=True)
    e = jnp.exp(u - m)
    s = e / jnp.sum(e, axis=-1, keepdims=True)

    out_ref[...] = s.astype(out_ref.dtype)


def _vmem_capacity_bytes():
    """Physical VMEM per TensorCore; conservative 64 MiB fallback."""
    try:
        info = pltpu.get_tpu_info()
        cap = getattr(info, "vmem_capacity_bytes", None)
        if cap:
            return int(cap)
    except Exception:
        pass
    return 64 * 1024 * 1024


def _pick_block_b(B, T, D, vmem_cap):
    """Batch rows per grid step, sized by bytes (generation-aware)."""
    # VMEM footprint per batch row of the enc tile uses padded dims
    # (sublane -> mult of 8, lane -> mult of 128); HBM traffic is unpadded.
    row_vmem = _round_up(T, 8) * _round_up(D, 128) * 4
    row_hbm = T * D * 4

    is_v7x = vmem_cap <= 64 * 1024 * 1024
    # DMA-amortization target in HBM bytes per step (~0.35 us step overhead):
    # v7x streams ~3.2 TB/s so it wants larger tiles than v5e/v6e.
    tile_target = (12 if is_v7x else 8) * 1024 * 1024

    vmem_budget = (3 * vmem_cap) // 4
    enc_budget = max(2 * 8 * row_vmem, vmem_budget - 8 * 1024 * 1024)

    by_hbm = tile_target // max(1, row_hbm)
    by_vmem = enc_budget // max(1, 2 * row_vmem)   # double-buffered enc tile
    rows = max(8, min(by_hbm, by_vmem))

    if B < 8:
        return B                                   # single full-batch block
    full = (B // 8) * 8                            # largest mult of 8 <= B
    block_b = min(rows, full)
    if is_v7x and full >= 16:
        # 2 TensorCores: ensure the parallel batch axis has >= 2 grid steps.
        block_b = min(block_b, max(8, ((full // 2) // 8) * 8))
    return max(8, (block_b // 8) * 8)


def _vmem_limit_bytes(block_b, T, D, vmem_cap):
    """VMEM limit tracking the chosen tile; capped at 3/4 of physical."""
    row_vmem = _round_up(T, 8) * _round_up(D, 128) * 4
    needed = (2 * block_b * row_vmem                                  # enc
              + 2 * _round_up(block_b, 8) * _round_up(D, 128) * 4     # query
              + 2 * _round_up(block_b, 8) * _round_up(T, 128) * 4     # out
              + 2 * _round_up(D, 8) * _round_up(D, 128) * 4           # W
              + 2 * 8 * 128 * 4                                       # v
              + 4 * 1024 * 1024)                                      # slack
    return int(min((3 * vmem_cap) // 4, max(needed, 32 * 1024 * 1024)))


def attention_forward(encoder_seq_proj, query, w_weight, v_weight, t=None,
                      block_b=None, tanh_bf16=False):
    """encoder_seq_proj: (B, T, D) f32, query: (B, D) f32.
    Returns scores of shape (B, 1, T), matching the PyTorch module.
    (`t` is unused; kept for interface parity with the PyTorch forward.)"""
    B, T, D = encoder_seq_proj.shape
    assert query.shape == (B, D)
    assert w_weight.shape == (D, D)
    assert v_weight.shape == (1, D)

    vmem_cap = _vmem_capacity_bytes()
    if block_b is None:
        block_b = _pick_block_b(B, T, D, vmem_cap)
    # Keep block_b valid: multiple of 8 and never exceeding B (last two dims
    # of the query/out BlockSpecs must be mult-of-8 or the full dim).
    if B < 8:
        block_b = B
    else:
        block_b = max(8, min((block_b // 8) * 8, (B // 8) * 8))

    vmem_limit = _vmem_limit_bytes(block_b, T, D, vmem_cap)
    grid = (pl.cdiv(B, block_b),)   # ragged last block, no wrapper pad copy

    kernel = functools.partial(_attention_kernel, tanh_bf16=tanh_bf16)

    scores2d = pl.pallas_call(
        kernel,
        out_shape=jax.ShapeDtypeStruct((B, T), jnp.float32),
        grid_spec=pl.GridSpec(
            grid=grid,
            in_specs=[
                pl.BlockSpec((block_b, T, D), lambda b: (b, 0, 0)),  # enc
                pl.BlockSpec((block_b, D), lambda b: (b, 0)),        # query
                pl.BlockSpec((D, D), lambda b: (0, 0)),              # W
                pl.BlockSpec((1, D), lambda b: (0, 0)),              # v
            ],
            out_specs=pl.BlockSpec((block_b, T), lambda b: (b, 0)),
        ),
        compiler_params=pltpu.CompilerParams(
            dimension_semantics=("parallel",),
            vmem_limit_bytes=vmem_limit,
        ),
    )(encoder_seq_proj, query, w_weight, v_weight)

    # Out-of-range rows of the ragged last block are never stored (output is
    # exactly (B, T)), so no slicing is needed — just restore (B, 1, T).
    return scores2d.reshape(B, 1, T)


if __name__ == "__main__":
    key = jax.random.PRNGKey(0)
    B, T, D = 12, 8, 32   # batch, encoder steps, attn_dims (small demo)

    k_enc, k_q, k_w, k_v = jax.random.split(key, 4)
    encoder_seq_proj = jax.random.normal(k_enc, (B, T, D), dtype=jnp.float32)
    query = jax.random.normal(k_q, (B, D), dtype=jnp.float32)

    # Deterministic parameter init (shapes from nn.Linear(attn_dims, attn_dims)
    # and nn.Linear(attn_dims, 1), both bias=False).
    bound = 1.0 / jnp.sqrt(D)
    w_weight = jax.random.uniform(k_w, (D, D), jnp.float32, -bound, bound)
    v_weight = jax.random.uniform(k_v, (1, D), jnp.float32, -bound, bound)

    # For B=12 the auto-picker lands on block_b=8 -> 2 grid steps with a
    # ragged last block (rows 8..11), exercising the no-pad path.
    scores = attention_forward(encoder_seq_proj, query, w_weight, v_weight, t=0)
    scores = jax.block_until_ready(scores)

    # Reference in plain JAX.
    qp_ref = query[:, None, :] @ w_weight.T                      # (B, 1, D)
    u_ref = jnp.squeeze(jnp.tanh(encoder_seq_proj + qp_ref) @ v_weight.T, -1)
    ref = jax.nn.softmax(u_ref, axis=-1)[:, None, :]             # (B, 1, T)

    assert scores.shape == (B, 1, T)
    # Softmax is now exact; remaining slack covers the default-precision
    # (bf16-pass) f32 MXU matmul in both the kernel and the XLA reference.
    assert jnp.allclose(scores, ref, atol=1e-3, rtol=1e-3)
    print("KERNEL_OK")
</pallas_src>

<mosaic_0001>
module attributes {stable_mosaic.version = 11 : i64} {
  func.func @_attention_kernel(%arg0: i32, %arg1: memref<8x8x32xf32, #tpu.memory_space<vmem>>, %arg2: memref<8x32xf32, #tpu.memory_space<vmem>>, %arg3: memref<32x32xf32, #tpu.memory_space<vmem>>, %arg4: memref<1x32xf32, #tpu.memory_space<vmem>>, %arg5: memref<8x8xf32, #tpu.memory_space<vmem>>) attributes {dimension_semantics = [#tpu.dimension_semantics<parallel>], iteration_bounds = array<i64: 2>, scalar_prefetch = 0 : i64, scratch_operands = 0 : i64, tpu.core_type = #tpu.core_type<tc>, window_params = [{transform_indices = @transform_0, window_bounds = array<i64: 8, 8, 32>}, {transform_indices = @transform_1, window_bounds = array<i64: 8, 32>}, {pipeline_mode = #tpu.pipeline_mode<synchronous>, transform_indices = @transform_2, window_bounds = array<i64: 32, 32>}, {pipeline_mode = #tpu.pipeline_mode<synchronous>, transform_indices = @transform_3, window_bounds = array<i64: 1, 32>}, {transform_indices = @transform_4, window_bounds = array<i64: 8, 8>}]} {
    %c0 = arith.constant 0 : index
    %c0_0 = arith.constant 0 : index
    %c0_1 = arith.constant 0 : index
    %0 = vector.load %arg1[%c0, %c0_0, %c0_1] : memref<8x8x32xf32, #tpu.memory_space<vmem>>, vector<8x8x32xf32>
    %c0_2 = arith.constant 0 : index
    %c0_3 = arith.constant 0 : index
    %1 = vector.load %arg2[%c0_2, %c0_3] : memref<8x32xf32, #tpu.memory_space<vmem>>, vector<8x32xf32>
    %c0_4 = arith.constant 0 : index
    %c0_5 = arith.constant 0 : index
    %2 = vector.load %arg3[%c0_4, %c0_5] : memref<32x32xf32, #tpu.memory_space<vmem>>, vector<32x32xf32>
    %c0_6 = arith.constant 0 : index
    %c0_7 = arith.constant 0 : index
    %3 = vector.load %arg4[%c0_6, %c0_7] : memref<1x32xf32, #tpu.memory_space<vmem>>, vector<1x32xf32>
    %cst = arith.constant dense<0.000000e+00> : vector<8x32xf32>
    %4 = tpu.matmul %1, %2, %cst {dimension_numbers = #tpu.dot_dimension_numbers<[1], [1], [0], [0], [0, 0, 1, 0], [], []>} : vector<8x32xf32>, vector<32x32xf32>, vector<8x32xf32> -> vector<8x32xf32>
    %5 = vector.shape_cast %4 : vector<8x32xf32> to vector<8x1x32xf32>
    %6 = vector.broadcast %5 : vector<8x1x32xf32> to vector<8x8x32xf32>
    %7 = arith.addf %0, %6 : vector<8x8x32xf32>
    %8 = math.tanh %7 : vector<8x8x32xf32>
    %9 = vector.shape_cast %3 : vector<1x32xf32> to vector<1x1x32xf32>
    %10 = vector.broadcast %9 : vector<1x1x32xf32> to vector<8x8x32xf32>
    %11 = arith.mulf %8, %10 : vector<8x8x32xf32>
    %cst_8 = arith.constant dense<0.000000e+00> : vector<8x8xf32>
    %12 = vector.multi_reduction <add>, %11, %cst_8 [2] : vector<8x8x32xf32> to vector<8x8xf32>
    %cst_9 = arith.constant dense<0xFF800000> : vector<8xf32>
    %13 = vector.multi_reduction <maximumf>, %12, %cst_9 [1] : vector<8x8xf32> to vector<8xf32>
    %14 = vector.shape_cast %13 : vector<8xf32> to vector<8x1xf32>
    %15 = vector.broadcast %14 : vector<8x1xf32> to vector<8x8xf32>
    %16 = arith.subf %12, %15 : vector<8x8xf32>
    %17 = math.exp %16 : vector<8x8xf32>
    %cst_10 = arith.constant dense<0.000000e+00> : vector<8xf32>
    %18 = vector.multi_reduction <add>, %17, %cst_10 [1] : vector<8x8xf32> to vector<8xf32>
    %19 = vector.shape_cast %18 : vector<8xf32> to vector<8x1xf32>
    %20 = vector.broadcast %19 : vector<8x1xf32> to vector<8x8xf32>
    %21 = arith.divf %17, %20 : vector<8x8xf32>
    %c0_11 = arith.constant 0 : index
    %c0_12 = arith.constant 0 : index
    %22 = vector.load %arg5[%c0_11, %c0_12] : memref<8x8xf32, #tpu.memory_space<vmem>>, vector<8x8xf32>
    tpu.vector_store %arg5[%c0_11, %c0_12], %21 {strides = array<i32>} : memref<8x8xf32, #tpu.memory_space<vmem>>, vector<8x8xf32>,
    return
  }
  func.func @transform_0(%arg0: i32) -> (i32, i32, i32) {
    %c0_i32 = arith.constant 0 : i32
    %c0_i32_0 = arith.constant 0 : i32
    %c0_i32_1 = arith.constant 0 : i32
    return %arg0, %c0_i32, %c0_i32_0 : i32, i32, i32
  }
  func.func @transform_1(%arg0: i32) -> (i32, i32) {
    %c0_i32 = arith.constant 0 : i32
    %c0_i32_0 = arith.constant 0 : i32
    return %arg0, %c0_i32 : i32, i32
  }
  func.func @transform_2(%arg0: i32) -> (i32, i32) {
    %c0_i32 = arith.constant 0 : i32
    %c0_i32_0 = arith.constant 0 : i32
    %c0_i32_1 = arith.constant 0 : i32
    return %c0_i32, %c0_i32_0 : i32, i32
  }
  func.func @transform_3(%arg0: i32) -> (i32, i32) {
    %c0_i32 = arith.constant 0 : i32
    %c0_i32_0 = arith.constant 0 : i32
    %c0_i32_1 = arith.constant 0 : i32
    return %c0_i32, %c0_i32_0 : i32, i32
  }
  func.func @transform_4(%arg0: i32) -> (i32, i32) {
    %c0_i32 = arith.constant 0 : i32
    %c0_i32_0 = arith.constant 0 : i32
    return %arg0, %c0_i32 : i32, i32
  }
}

</mosaic_0001>

<llo_original>
// kernel: tpu_custom_call.1
$region0: #{tpu_custom_call.1}
  #allocation0 [shape = 'u32[]', space=smem, size = 0x4, offset = 0x4, fixed_abs, tag = 'smem constant byte address 0x4 - core index']
  #allocation1 [shape = 'u32[144,128]{1,0:T(1,128)}', space=vmem, size = 0x12000, scoped, tag = 'internal scratch']
  %s0 = inlined_call_operand.hbm [shape: f32[12,8,32], index: 0, kind: input, shape index: {}]
  %s1 = inlined_call_operand.hbm [shape: f32[12,32], index: 1, kind: input, shape index: {}]
  %s2 = inlined_call_operand.hbm [shape: f32[32,32], index: 2, kind: input, shape index: {}]
  %s3 = inlined_call_operand.vmem [shape: f32[1,32], index: 3, kind: input, shape index: {}]
  %s4 = inlined_call_operand.vmem [shape: f32[12,8], index: 4, kind: output, shape index: {}]
  %s5 = sld [smem:[#allocation0]]
  $region61: #{tpu_custom_call.1} parent=0
    _
  %s7 = ssub.s32 1, %s5
  %s8 = scalar_select 0, %s7, %s5
  $region1: #{tpu_custom_call.1} parent=0
    #allocation2 [shape = 'u8[65536]{0}', space=vmem, size = 0x10000, scoped, tag = 'input window, operand 0']
    #allocation3 [shape = 's32[2]{0}', space=sflag, size = 0x8, scoped, tag = 'scoped memory for tpu_custom_call.1']
    #allocation4 [shape = 'u8[8192]{0}', space=vmem, size = 0x2000, scoped, tag = 'input window, operand 1']
    #allocation5 [shape = 's32[2]{0}', space=sflag, size = 0x8, scoped, tag = 'scoped memory for tpu_custom_call.1']
    #allocation6 [shape = 'u8[16384]{0}', space=vmem, size = 0x4000, scoped, tag = 'input window, operand 2, single buffered']
    %9 = vsyncpa [#allocation3], 0
    %s10 = scalar_lea.sflag [#allocation3], 1
    %11 = vsyncpa %s10, 0
    %12 = vsyncpa [#allocation5], 0
    %s13 = scalar_lea.sflag [#allocation5], 1
    %14 = vsyncpa %s13, 0
    loop: start=0, step=1, limit=4
    $region2: #{tpu_custom_call.1} parent=1 // loop_pre_header
      _
    $region3: #{tpu_custom_call.1} parent=1 // loop_header
      %s16 = sphi 0, %s20
      %p17 = scmp.ge.s32.totalorder %s16, 4
      %s26 = sphi 0, %s28
      %s29 = sphi 0, %s26
      %s30 = sphi 0, %s29
      %s46 = sphi 0, %s30
      %s52 = sphi 0, %s54
      %s55 = sphi 0, %s52
      %s56 = sphi 0, %s55
      %s72 = sphi 0, %s56
      %s76 = sphi 0, %s76
      %s78 = sphi 0, %s76
      %s79 = sphi 0, %s78
      %s93 = sphi 0, %s79
      %s97 = sphi 0, %s97
      %s99 = sphi 0, %s97
      %s100 = sphi 0, %s99
      %s114 = sphi 0, %s100
      %s120 = sphi 0, %s122
      %s123 = sphi 0, %s120
      %s124 = sphi 0, %s123
      %s140 = sphi 0, %s124
    $region4: #{tpu_custom_call.1} parent=1 // loop_header_branch
      %19 = sbr.rel (%p17) target = $region8
    $region5: #{tpu_custom_call.1} parent=1 // loop_body
      %s21 = ssub.s32 %s16, 1
      %s22 = ssub.s32 %s16, 2
      %s23 = sadd.s32 %s16, 1
      %s24 = ssub.s32 %s16, %s23
      %p25 = scmp.eq.s32.totalorder %s24, 0
      %s27 = sadd.s32 %s26, 1
      %s28 = scalar_select %p25, %s26, %s27
      %p31 = pneg %p25
      %p32 = scmp.eq.s32.totalorder %s16, 1
      %p33 = por %p31, %p32
      %p34 = scmp.ne.s32.totalorder %s26, %s29
      %p35 = scmp.eq.s32.totalorder %s16, 0
      %p36 = por %p34, %p35
      %p37 = scmp.ne.s32.totalorder %s26, %s29
      %p38 = scmp.eq.s32.totalorder %s21, 1
      %p39 = por %p37, %p38
      %p40 = scmp.ne.s32.totalorder %s29, %s30
      %p41 = scmp.eq.s32.totalorder %s21, 0
      %p42 = por %p40, %p41
      %p43 = scmp.ne.s32.totalorder %s29, %s30
      %p44 = scmp.eq.s32.totalorder %s22, 1
      %p45 = por %p43, %p44
      %p47 = scmp.ne.s32.totalorder %s30, %s46
      %p48 = scmp.eq.s32.totalorder %s22, 0
      %p49 = por %p47, %p48
      %s50 = ssub.s32 %s16, %s23
      %p51 = scmp.eq.s32.totalorder %s50, 0
      %s53 = sadd.s32 %s52, 1
      %s54 = scalar_select %p51, %s52, %s53
      %p57 = pneg %p51
      %p58 = scmp.eq.s32.totalorder %s16, 1
      %p59 = por %p57, %p58
      %p60 = scmp.ne.s32.totalorder %s52, %s55
      %p61 = scmp.eq.s32.totalorder %s16, 0
      %p62 = por %p60, %p61
      %p63 = scmp.ne.s32.totalorder %s52, %s55
      %p64 = scmp.eq.s32.totalorder %s21, 1
      %p65 = por %p63, %p64
      %p66 = scmp.ne.s32.totalorder %s55, %s56
      %p67 = scmp.eq.s32.totalorder %s21, 0
      %p68 = por %p66, %p67
      %p69 = scmp.ne.s32.totalorder %s55, %s56
      %p70 = scmp.eq.s32.totalorder %s22, 1
      %p71 = por %p69, %p70
      %p73 = scmp.ne.s32.totalorder %s56, %s72
      %p74 = scmp.eq.s32.totalorder %s22, 0
      %p75 = por %p73, %p74
      %s77 = sadd.s32 %s76, 1
      %p80 = scmp.eq.s32.totalorder %s16, 1
      %p81 = scmp.ne.s32.totalorder %s76, %s78
      %p82 = scmp.eq.s32.totalorder %s16, 0
      %p83 = por %p81, %p82
      %p84 = scmp.ne.s32.totalorder %s76, %s78
      %p85 = scmp.eq.s32.totalorder %s21, 1
      %p86 = por %p84, %p85
      %p87 = scmp.ne.s32.totalorder %s78, %s79
      %p88 = scmp.eq.s32.totalorder %s21, 0
      %p89 = por %p87, %p88
      %p90 = scmp.ne.s32.totalorder %s78, %s79
      %p91 = scmp.eq.s32.totalorder %s22, 1
      %p92 = por %p90, %p91
      %p94 = scmp.ne.s32.totalorder %s79, %s93
      %p95 = scmp.eq.s32.totalorder %s22, 0
      %p96 = por %p94, %p95
      %s98 = sadd.s32 %s97, 1
      %p101 = scmp.eq.s32.totalorder %s16, 1
      %p102 = scmp.ne.s32.totalorder %s97, %s99
      %p103 = scmp.eq.s32.totalorder %s16, 0
      %p104 = por %p102, %p103
      %p105 = scmp.ne.s32.totalorder %s97, %s99
      %p106 = scmp.eq.s32.totalorder %s21, 1
      %p107 = por %p105, %p106
      %p108 = scmp.ne.s32.totalorder %s99, %s100
      %p109 = scmp.eq.s32.totalorder %s21, 0
      %p110 = por %p108, %p109
      %p111 = scmp.ne.s32.totalorder %s99, %s100
      %p112 = scmp.eq.s32.totalorder %s22, 1
      %p113 = por %p111, %p112
      %p115 = scmp.ne.s32.totalorder %s100, %s114
      %p116 = scmp.eq.s32.totalorder %s22, 0
      %p117 = por %p115, %p116
      %s118 = ssub.s32 %s16, %s23
      %p119 = scmp.eq.s32.totalorder %s118, 0
      %s121 = sadd.s32 %s120, 1
      %s122 = scalar_select %p119, %s120, %s121
      %p125 = pneg %p119
      %p126 = scmp.eq.s32.totalorder %s16, 1
      %p127 = por %p125, %p126
      %p128 = scmp.ne.s32.totalorder %s120, %s123
      %p129 = scmp.eq.s32.totalorder %s16, 0
      %p130 = por %p128, %p129
      %p131 = scmp.ne.s32.totalorder %s120, %s123
      %p132 = scmp.eq.s32.totalorder %s21, 1
      %p133 = por %p131, %p132
      %p134 = scmp.ne.s32.totalorder %s123, %s124
      %p135 = scmp.eq.s32.totalorder %s21, 0
      %p136 = por %p134, %p135
      %p137 = scmp.ne.s32.totalorder %s123, %s124
      %p138 = scmp.eq.s32.totalorder %s22, 1
      %p139 = por %p137, %p138
      %p141 = scmp.ne.s32.totalorder %s124, %s140
      %p142 = scmp.eq.s32.totalorder %s22, 0
      %p143 = por %p141, %p142
      %p144 = scmp.le.s32.totalorder 1, %s16
      %p145 = scmp.lt.s32.totalorder %s16, 3
      %p146 = pnand %p144, %p145
      %p147 = pneg %p146
      // Predicated region
      $region9: #{tpu_custom_call.1} parent=5 // pred_check
        _
      $region10: #{tpu_custom_call.1} parent=5 // pred_check_branch
        %149 = sbr.rel (%p146) target = $region12
      $region11: #{tpu_custom_call.1} parent=5 // pred_region
        %s150 = ssub.s32 %s16, 1
        // Predicated region
        $region13: #{tpu_custom_call.1} parent=11 // pred_check
          %p151 = pneg %p89
        $region14: #{tpu_custom_call.1} parent=11 // pred_check_branch
          %153 = sbr.rel (%p151) target = $region16
        $region15: #{tpu_custom_call.1} parent=11 // pred_region
          %s155 = ssub.s32 512, 512
          %156 = vsyncadd [#allocation5], %s155
          %s157 = sshll.u32 [#allocation6], 4
          %s158 = int_to_ptr.vmem [resolvable:$true] %s157
          %163 = dma.hbm_to_vmem [thread:$0]  %s2, 512, %s158, [#allocation5], 128, 128, 8
        $region16: #{tpu_custom_call.1} parent=11 // pred_fallthru
          _
        // Predicated region
        $region17: #{tpu_custom_call.1} parent=11 // pred_check
          %p164 = pneg %p110
        $region18: #{tpu_custom_call.1} parent=11 // pred_check_branch
          %166 = sbr.rel (%p164) target = $region20
        $region19: #{tpu_custom_call.1} parent=11 // pred_region
          _
        $region20: #{tpu_custom_call.1} parent=11 // pred_fallthru
          _
      $region12: #{tpu_custom_call.1} parent=5 // pred_fallthru
        _
      %p167 = scmp.lt.s32.totalorder %s16, 2
      // Predicated region
      $region21: #{tpu_custom_call.1} parent=5 // pred_check
        %p168 = pneg %p167
      $region22: #{tpu_custom_call.1} parent=5 // pred_check_branch
        %170 = sbr.rel (%p168) target = $region24
      $region23: #{tpu_custom_call.1} parent=5 // pred_region
        // Predicated region
        $region25: #{tpu_custom_call.1} parent=23 // pred_check
          %p171 = pneg %p36
        $region26: #{tpu_custom_call.1} parent=23 // pred_check_branch
          %173 = sbr.rel (%p171) target = $region28
        $region27: #{tpu_custom_call.1} parent=23 // pred_region
          %s174 = sand.u32 %s26, 1
          %s175 = scalar_lea.sflag [#allocation3], %s174
          %s176 = sand.u32 %s26, 1
          %s177 = smul.addr %s176, 64
          %s178 = scalar_lea.vmem [#allocation2], %s177
          %s179 = smul.u32 8, %s16
          %s180 = ssub.s32 12, %s179
          %p181 = scmp.lt.s32.totalorder %s180, 8
          %s182 = scalar_select %p181, %s180, 8
          %s183 = smul.u32 128, %s182
          %s185 = ssub.s32 1024, %s183
          %186 = vsyncadd %s175, %s185
          %p187 = scmp.ne.s32.totalorder 0, %s183
          %s188 = smul.addr %s179, 128
          %s189 = scalar_lea.hbm %s0, %s188
          %s190 = smul.u32 8, %s182
          %s191 = sshll.u32 %s178, 4
          %s192 = int_to_ptr.vmem [resolvable:$true] %s191
          %s193 = sshll.u32 %s190, 4
          %197 = dma.hbm_to_vmem [thread:$0]  (%p187), %s189, %s193, %s192, %s175, 128, 128, 8
        $region28: #{tpu_custom_call.1} parent=23 // pred_fallthru
          _
        // Predicated region
        $region29: #{tpu_custom_call.1} parent=23 // pred_check
          %p198 = pneg %p62
        $region30: #{tpu_custom_call.1} parent=23 // pred_check_branch
          %200 = sbr.rel (%p198) target = $region32
        $region31: #{tpu_custom_call.1} parent=23 // pred_region
          %s201 = sand.u32 %s16, 1
          %s202 = scalar_lea.sflag [#allocation5], %s201
          %s203 = sand.u32 %s52, 1
          %s204 = smul.addr %s203, 8
          %s205 = scalar_lea.vmem [#allocation4], %s204
          %s207 = ssub.s32 128, 128
          %208 = vsyncadd %s202, %s207
          %s209 = smul.addr %s16, 128
          %s210 = scalar_lea.hbm %s1, %s209
          %s212 = sshll.u32 %s205, 4
          %s213 = int_to_ptr.vmem [resolvable:$true] %s212
          %215 = dma.hbm_to_vmem [thread:$0]  %s210, 128, %s213, %s202
        $region32: #{tpu_custom_call.1} parent=23 // pred_fallthru
          _
      $region24: #{tpu_custom_call.1} parent=5 // pred_fallthru
        _
      %p216 = scmp.le.s32.totalorder 1, %s16
      %p217 = scmp.lt.s32.totalorder %s16, 3
      %p218 = pnand %p216, %p217
      %p219 = pneg %p218
      // Predicated region
      $region33: #{tpu_custom_call.1} parent=5 // pred_check
        _
      $region34: #{tpu_custom_call.1} parent=5 // pred_check_branch
        %221 = sbr.rel (%p218) target = $region36
      $region35: #{tpu_custom_call.1} parent=5 // pred_region
        %s222 = ssub.s32 %s16, 1
        %s223 = sand.u32 %s29, 1
        %s224 = scalar_lea.sflag [#allocation3], %s223
        %s225 = sand.u32 %s29, 1
        %s226 = smul.addr %s225, 64
        %s227 = scalar_lea.vmem [#allocation2], %s226
        // Predicated region
        $region37: #{tpu_custom_call.1} parent=35 // pred_check
          %p228 = pneg %p42
        $region38: #{tpu_custom_call.1} parent=35 // pred_check_branch
          %230 = sbr.rel (%p228) target = $region40
        $region39: #{tpu_custom_call.1} parent=35 // pred_region
          %231 = dma.done %s224, 1024
        $region40: #{tpu_custom_call.1} parent=35 // pred_fallthru
          _
        %s232 = sand.u32 %s21, 1
        %s233 = scalar_lea.sflag [#allocation5], %s232
        %s234 = sand.u32 %s55, 1
        %s235 = smul.addr %s234, 8
        %s236 = scalar_lea.vmem [#allocation4], %s235
        // Predicated region
        $region41: #{tpu_custom_call.1} parent=35 // pred_check
          %p237 = pneg %p68
        $region42: #{tpu_custom_call.1} parent=35 // pred_check_branch
          %239 = sbr.rel (%p237) target = $region44
        $region43: #{tpu_custom_call.1} parent=35 // pred_region
          %240 = dma.done %s233, 128
        $region44: #{tpu_custom_call.1} parent=35 // pred_fallthru
          _
        // Predicated region
        $region45: #{tpu_custom_call.1} parent=35 // pred_check
          %p241 = pneg %p89
        $region46: #{tpu_custom_call.1} parent=35 // pred_check_branch
          %243 = sbr.rel (%p241) target = $region48
        $region47: #{tpu_custom_call.1} parent=35 // pred_region
          %244 = dma.done [#allocation5], 512
        $region48: #{tpu_custom_call.1} parent=35 // pred_fallthru
          _
        %s245 = sand.u32 %s29, 1
        %s246 = scalar_lea.sflag [#allocation3], %s245
        %s247 = sand.u32 %s29, 1
        %s248 = smul.addr %s247, 64
        %s249 = scalar_lea.vmem [#allocation2], %s248
        %p250 = pneg %p42
        %p251 = pneg %p39
        %s252 = sand.u32 %s21, 1
        %s253 = scalar_lea.sflag [#allocation5], %s252
        %s254 = sand.u32 %s55, 1
        %s255 = smul.addr %s254, 8
        %s256 = scalar_lea.vmem [#allocation4], %s255
        %p257 = pneg %p68
        %p258 = pneg %p65
        %p259 = pneg %p89
        %p260 = pneg %p86
        %p261 = pneg %p110
        %p262 = pneg %p107
        %p263 = pneg %p136
        %p264 = pneg %p133
        %p265 = scmp.lt.s32.totalorder %s21, 1
        %s266 = scalar_select %p265, %s21, 1
        %s267 = smul.addr %s266, 8
        %s268 = scalar_lea.vmem %s4, %s267
        %s269 = smul.u32 8, %s21
        %s270 = ssub.s32 12, %s269
        %p271 = scmp.lt.s32.totalorder %s270, 8
        %s272 = scalar_select %p271, %s270, 8
        %s273 = smul.u32 128, %s272
        %p274 = scmp.lt.s32.totalorder %s21, 1
        %s275 = scalar_select %p274, %s21, 1
        %s276 = smul.addr %s275, 8
        %s277 = scalar_lea.vmem %s4, %s276
        %v278 = vld [vmem:[%s227] sm:$0xff]
        %v279 = vld [vmem:[%s227 + $0x8] sm:$0xff]
        %v280 = vld [vmem:[%s227 + $0x10] sm:$0xff]
        %v281 = vld [vmem:[%s227 + $0x18] sm:$0xff]
        %v282 = vld [vmem:[%s227 + $0x20] sm:$0xff]
        %v283 = vld [vmem:[%s227 + $0x28] sm:$0xff]
        %v284 = vld [vmem:[%s227 + $0x30] sm:$0xff]
        %v285 = vld [vmem:[%s227 + $0x38] sm:$0xff]
        %v286 = vld [vmem:[%s236] sm:$0xff]
        %v287 = vld [vmem:[#allocation6] sm:$0xff]
        %v288 = vld [vmem:[#allocation6 + $0x8] sm:$0xff]
        %v289 = vld [vmem:[#allocation6 + $0x10] sm:$0xff]
        %v290 = vld [vmem:[#allocation6 + $0x18] sm:$0xff]
        %v291 = vld [vmem:[%s3] sm:$0x1]
        %vm292 = vcmask 261120
        %v294 = vsel %vm292, %v286, 0
        %v297 = vsel %vm292, %v287, 0
        %v300 = vsel %vm292, %v288, 0
        %v303 = vsel %vm292, %v289, 0
        %v306 = vsel %vm292, %v290, 0
        %308 = vmatprep.subr.mxu0 0.0
        %309 = vmatpush1.xpose.msra.mxu0 %v297
        %310 = vmatprep.subr.mxu0 0.0
        %311 = vmatpush1.xpose.msra.mxu0 %v300
        %312 = vmatprep.subr.mxu0 0.0
        %313 = vmatpush1.xpose.msra.mxu0 %v303
        %314 = vmatprep.subr.mxu0 0.0
        %315 = vmatpush1.xpose.msra.mxu0 %v306
        %316 = vmatprep.subr.mxu0 0.0
        %317 = vmatpush1.xpose.msra.mxu0 0.0
        %318 = vmatprep.subr.mxu0 0.0
        %319 = vmatpush1.xpose.msra.mxu0 0.0
        %320 = vmatprep.subr.mxu0 0.0
        %321 = vmatpush1.xpose.msra.mxu0 0.0
        %322 = vmatprep.subr.mxu0 0.0
        %323 = vmatpush1.xpose.msra.mxu0 0.0
        %324 = vmatprep.subr.mxu0 0.0
        %325 = vmatpush1.xpose.msra.mxu0 0.0
        %326 = vmatprep.subr.mxu0 0.0
        %327 = vmatpush1.xpose.msra.mxu0 0.0
        %328 = vmatprep.subr.mxu0 0.0
        %329 = vmatpush1.xpose.msra.mxu0 0.0
        %330 = vmatprep.subr.mxu0 0.0
        %331 = vmatpush1.xpose.msra.mxu0 0.0
        %332 = vmatprep.subr.mxu0 0.0
        %333 = vmatpush1.xpose.msra.mxu0 0.0
        %334 = vmatprep.subr.mxu0 0.0
        %335 = vmatpush1.xpose.msra.mxu0 0.0
        %336 = vmatprep.subr.mxu0 0.0
        %337 = vmatpush1.xpose.msra.mxu0 0.0
        %338 = vmatprep.subr.mxu0 0.0
        %339 = vmatpush1.xpose.msra.mxu0 0.0
        %340 = vmatprep.subr.mxu0 0.0
        %341 = vmatpush1.xpose.msra.mxu0 0.0
        %342 = vmatprep.subr.mxu0 0.0
        %343 = vmatpush1.xpose.msra.mxu0 0.0
        %344 = vmatprep.subr.mxu0 0.0
        %345 = vmatpush1.xpose.msra.mxu0 0.0
        %346 = vmatprep.subr.mxu0 0.0
        %347 = vmatpush1.xpose.msra.mxu0 0.0
        %348 = vmatprep.subr.mxu0 0.0
        %349 = vmatpush1.xpose.msra.mxu0 0.0
        %350 = vmatprep.subr.mxu0 0.0
        %351 = vmatpush1.xpose.msra.mxu0 0.0
        %352 = vmatprep.subr.mxu0 0.0
        %353 = vmatpush1.xpose.msra.mxu0 0.0
        %354 = vmatprep.subr.mxu0 0.0
        %355 = vmatpush1.xpose.msra.mxu0 0.0
        %356 = vmatprep.subr.mxu0 0.0
        %357 = vmatpush1.xpose.msra.mxu0 0.0
        %358 = vmatprep.subr.mxu0 0.0
        %359 = vmatpush1.xpose.msra.mxu0 0.0
        %360 = vmatprep.subr.mxu0 0.0
        %361 = vmatpush1.xpose.msra.mxu0 0.0
        %362 = vmatprep.subr.mxu0 0.0
        %363 = vmatpush1.xpose.msra.mxu0 0.0
        %364 = vmatprep.subr.mxu0 0.0
        %365 = vmatpush1.xpose.msra.mxu0 0.0
        %366 = vmatprep.subr.mxu0 0.0
        %367 = vmatpush1.xpose.msra.mxu0 0.0
        %368 = vmatprep.subr.mxu0 0.0
        %369 = vmatpush1.xpose.msra.mxu0 0.0
        %370 = vmatprep.subr.mxu0 0.0
        %371 = vmatpush1.xpose.msra.mxu0 0.0
        %372 = vmatprep.mubr.f32.mxu0 0.0
        %373 = vmatmul.mubr.f32.gmra.mrb[0].mxu0 %v294
        %v374 = vpop.f32.mrb[0].mxu0
        %v375 = vadd.f32 0.0, %v374
        %v376 = vpop.f32.mrb[0].mxu0
        %377 = vdwg.mxu0
        %v379 = vcombine.high %v375, %v375
        %v381 = vunpack.c.l.s4 1966171168
        %v382 = vunpack.c.0.s8 %v381
        %v383 = vlaneseq
        %v384 = vshrl.u32 %v383, 7
        %v385 = vsub.s32 %v382, %v384
        %v386 = vrot.slane %v375, %v385
        %v388 = vunpack.c.l.s4 1966171168
        %v389 = vunpack.c.0.s8 %v388
        %v390 = vlaneseq
        %v391 = vshrl.u32 %v390, 7
        %v392 = vsub.s32 %v389, %v391
        %v393 = vrot.slane %v379, %v392
        %v394 = vcombine.high %v386, %v386
        %v395 = vcombine.high %v393, %v393
        %v397 = vunpack.c.l.s4 1966171168
        %v398 = vunpack.c.0.s8 %v397
        %v399 = vlaneseq
        %v400 = vshrl.u32 %v399, 7
        %v401 = vsub.s32 %v398, %v400
        %v402 = vrot.slane %v386, %v401
        %v404 = vunpack.c.l.s4 1966171168
        %v405 = vunpack.c.0.s8 %v404
        %v406 = vlaneseq
        %v407 = vshrl.u32 %v406, 7
        %v408 = vsub.s32 %v405, %v407
        %v409 = vrot.slane %v393, %v408
        %v411 = vunpack.c.l.s4 1966171168
        %v412 = vunpack.c.0.s8 %v411
        %v413 = vlaneseq
        %v414 = vshrl.u32 %v413, 7
        %v415 = vsub.s32 %v412, %v414
        %v416 = vrot.slane %v394, %v415
        %v418 = vunpack.c.l.s4 1966171168
        %v419 = vunpack.c.0.s8 %v418
        %v420 = vlaneseq
        %v421 = vshrl.u32 %v420, 7
        %v422 = vsub.s32 %v419, %v421
        %v423 = vrot.slane %v395, %v422
        %v424 = vcombine.high %v402, %v402
        %v425 = vcombine.high %v409, %v409
        %v426 = vcombine.high %v416, %v416
        %v427 = vcombine.high %v423, %v423
        %v428 = vlaneseq
        %v429 = vshrl.u32 %v428, 7
        %v430 = vsub.s32 0, %v429
        %v431 = vrot.slane %v402, %v430
        %v432 = vlaneseq
        %v433 = vshrl.u32 %v432, 7
        %v434 = vsub.s32 0, %v433
        %v435 = vrot.slane %v416, %v434
        %v436 = vlaneseq
        %v437 = vshrl.u32 %v436, 7
        %v438 = vsub.s32 0, %v437
        %v439 = vrot.slane %v424, %v438
        %v440 = vlaneseq
        %v441 = vshrl.u32 %v440, 7
        %v442 = vsub.s32 0, %v441
        %v443 = vrot.slane %v426, %v442
        %v444 = vlaneseq
        %v445 = vshrl.u32 %v444, 7
        %v446 = vsub.s32 0, %v445
        %v447 = vrot.slane %v409, %v446
        %v448 = vlaneseq
        %v449 = vshrl.u32 %v448, 7
        %v450 = vsub.s32 0, %v449
        %v451 = vrot.slane %v423, %v450
        %v452 = vlaneseq
        %v453 = vshrl.u32 %v452, 7
        %v454 = vsub.s32 0, %v453
        %v455 = vrot.slane %v425, %v454
        %v456 = vlaneseq
        %v457 = vshrl.u32 %v456, 7
        %v458 = vsub.s32 0, %v457
        %v459 = vrot.slane %v427, %v458
        %v468 = vadd.f32 %v278, %v431
        %v469 = vadd.f32 %v279, %v435
        %v470 = vadd.f32 %v280, %v439
        %v471 = vadd.f32 %v281, %v443
        %v472 = vadd.f32 %v282, %v447
        %v473 = vadd.f32 %v283, %v451
        %v474 = vadd.f32 %v284, %v455
        %v475 = vadd.f32 %v285, %v459
        %v476 = vtanh.pop %v468
        %v477 = vtanh.pop %v469
        %v478 = vtanh.pop %v470
        %v479 = vtanh.pop %v471
        %v480 = vtanh.pop %v472
        %v481 = vtanh.pop %v473
        %v482 = vtanh.pop %v474
        %v483 = vtanh.pop %v475
        %v485 = vlaneseq
        %v486 = vshrl.u32 %v485, 7
        %v487 = vsub.s32 0, %v486
        %v488 = vrot.slane %v291, %v487
        %v490 = vmul.f32 %v476, %v488
        %v491 = vmul.f32 %v477, %v488
        %v492 = vmul.f32 %v478, %v488
        %v493 = vmul.f32 %v479, %v488
        %v494 = vmul.f32 %v480, %v488
        %v495 = vmul.f32 %v481, %v488
        %v496 = vmul.f32 %v482, %v488
        %v497 = vmul.f32 %v483, %v488
        %v498 = vsel %vm292, %v490, 0.0
        %499 = vadd.xlane.f32.xlu0 %v498
        %v500 = vpop.xlane.xlu0 %499
        %v501 = vsel %vm292, %v491, 0.0
        %502 = vadd.xlane.f32.xlu0 %v501
        %v503 = vpop.xlane.xlu0 %502
        %v504 = vsel %vm292, %v492, 0.0
        %505 = vadd.xlane.f32.xlu0 %v504
        %v506 = vpop.xlane.xlu0 %505
        %v507 = vsel %vm292, %v493, 0.0
        %508 = vadd.xlane.f32.xlu0 %v507
        %v509 = vpop.xlane.xlu0 %508
        %v510 = vsel %vm292, %v494, 0.0
        %511 = vadd.xlane.f32.xlu0 %v510
        %v512 = vpop.xlane.xlu0 %511
        %v513 = vsel %vm292, %v495, 0.0
        %514 = vadd.xlane.f32.xlu0 %v513
        %v515 = vpop.xlane.xlu0 %514
        %v516 = vsel %vm292, %v496, 0.0
        %517 = vadd.xlane.f32.xlu0 %v516
        %v518 = vpop.xlane.xlu0 %517
        %v519 = vsel %vm292, %v497, 0.0
        %520 = vadd.xlane.f32.xlu0 %v519
        %v521 = vpop.xlane.xlu0 %520
        %v530 = vlaneseq
        %v531 = vand.u32 %v530, 127
        %v532 = vlaneseq
        %v533 = vshrl.u32 %v532, 7
        %v534 = vsub.s32 %v531, %v533
        %v535 = vrot.slane %v500, %v534
        %v536 = vlaneseq
        %v537 = vshrl.u32 %v536, 7
        %v538 = vsub.s32 %v531, %v537
        %v539 = vrot.slane %v503, %v538
        %v540 = vlaneseq
        %v541 = vshrl.u32 %v540, 7
        %v542 = vsub.s32 %v531, %v541
        %v543 = vrot.slane %v506, %v542
        %v544 = vlaneseq
        %v545 = vshrl.u32 %v544, 7
        %v546 = vsub.s32 %v531, %v545
        %v547 = vrot.slane %v509, %v546
        %v548 = vlaneseq
        %v549 = vshrl.u32 %v548, 7
        %v550 = vsub.s32 %v531, %v549
        %v551 = vrot.slane %v512, %v550
        %v552 = vlaneseq
        %v553 = vshrl.u32 %v552, 7
        %v554 = vsub.s32 %v531, %v553
        %v555 = vrot.slane %v515, %v554
        %v556 = vlaneseq
        %v557 = vshrl.u32 %v556, 7
        %v558 = vsub.s32 %v531, %v557
        %v559 = vrot.slane %v518, %v558
        %v560 = vlaneseq
        %v561 = vshrl.u32 %v560, 7
        %v562 = vsub.s32 %v531, %v561
        %v563 = vrot.slane %v521, %v562
        %vm564 = vcmask 1041409
        %v565 = vsel %vm564, %v539, %v535
        %vm566 = vcmask 1042434
        %v567 = vsel %vm566, %v543, %v565
        %vm568 = vcmask 1043459
        %v569 = vsel %vm568, %v547, %v567
        %vm570 = vcmask 1044484
        %v571 = vsel %vm570, %v551, %v569
        %vm572 = vcmask 1045509
        %v573 = vsel %vm572, %v555, %v571
        %vm574 = vcmask 1046534
        %v575 = vsel %vm574, %v559, %v573
        %vm576 = vcmask 1047559
        %v577 = vsel %vm576, %v563, %v575
        %vm579 = vcmask 64512
        %v580 = vsel %vm579, %v577, -inf
        %581 = vmax.xlane.f32.xlu0 %v580
        %v582 = vpop.xlane.xlu0 %581
        %v584 = vlaneseq
        %v585 = vshrl.u32 %v584, 7
        %v586 = vsub.s32 0, %v585
        %v587 = vrot.slane %v582, %v586
        %v588 = vlaneseq
        %v589 = vshrl.u32 %v588, 7
        %v590 = vsub.s32 1, %v589
        %v591 = vrot.slane %v582, %v590
        %v592 = vlaneseq
        %v593 = vshrl.u32 %v592, 7
        %v594 = vsub.s32 2, %v593
        %v595 = vrot.slane %v582, %v594
        %v596 = vlaneseq
        %v597 = vshrl.u32 %v596, 7
        %v598 = vsub.s32 3, %v597
        %v599 = vrot.slane %v582, %v598
        %v600 = vlaneseq
        %v601 = vshrl.u32 %v600, 7
        %v602 = vsub.s32 4, %v601
        %v603 = vrot.slane %v582, %v602
        %v604 = vlaneseq
        %v605 = vshrl.u32 %v604, 7
        %v606 = vsub.s32 5, %v605
        %v607 = vrot.slane %v582, %v606
        %v608 = vlaneseq
        %v609 = vshrl.u32 %v608, 7
        %v610 = vsub.s32 6, %v609
        %v611 = vrot.slane %v582, %v610
        %v612 = vlaneseq
        %v613 = vshrl.u32 %v612, 7
        %v614 = vsub.s32 7, %v613
        %v615 = vrot.slane %v582, %v614
        %v624 = vsub.f32 %v500, %v587
        %v625 = vsub.f32 %v503, %v591
        %v626 = vsub.f32 %v506, %v595
        %v627 = vsub.f32 %v509, %v599
        %v628 = vsub.f32 %v512, %v603
        %v629 = vsub.f32 %v515, %v607
        %v630 = vsub.f32 %v518, %v611
        %v631 = vsub.f32 %v521, %v615
        %v632 = vmul.f32 %v624, 1.442695
        %v633 = vpow.pop %v632
        %v634 = vmul.f32 %v625, 1.442695
        %v635 = vpow.pop %v634
        %v636 = vmul.f32 %v626, 1.442695
        %v637 = vpow.pop %v636
        %v638 = vmul.f32 %v627, 1.442695
        %v639 = vpow.pop %v638
        %v640 = vmul.f32 %v628, 1.442695
        %v641 = vpow.pop %v640
        %v642 = vmul.f32 %v629, 1.442695
        %v643 = vpow.pop %v642
        %v644 = vmul.f32 %v630, 1.442695
        %v645 = vpow.pop %v644
        %v646 = vmul.f32 %v631, 1.442695
        %v647 = vpow.pop %v646
        %656 = vset.pattern.permute.xlu0 0
        %657 = vperm.xlu0 %656, %v633
        %v658 = vpop.permute.xlu0 %657
        %659 = vset.pattern.permute.xlu0 0
        %660 = vperm.xlu0 %659, %v635
        %v661 = vpop.permute.xlu0 %660
        %662 = vset.pattern.permute.xlu0 0
        %663 = vperm.xlu0 %662, %v637
        %v664 = vpop.permute.xlu0 %663
        %665 = vset.pattern.permute.xlu0 0
        %666 = vperm.xlu0 %665, %v639
        %v667 = vpop.permute.xlu0 %666
        %668 = vset.pattern.permute.xlu0 0
        %669 = vperm.xlu0 %668, %v641
        %v670 = vpop.permute.xlu0 %669
        %671 = vset.pattern.permute.xlu0 0
        %672 = vperm.xlu0 %671, %v643
        %v673 = vpop.permute.xlu0 %672
        %674 = vset.pattern.permute.xlu0 0
        %675 = vperm.xlu0 %674, %v645
        %v676 = vpop.permute.xlu0 %675
        %677 = vset.pattern.permute.xlu0 0
        %678 = vperm.xlu0 %677, %v647
        %v679 = vpop.permute.xlu0 %678
        %v680 = vlaneseq
        %v681 = vshrl.u32 %v680, 7
        %v682 = vsub.s32 %v531, %v681
        %v683 = vrot.slane %v658, %v682
        %v684 = vlaneseq
        %v685 = vshrl.u32 %v684, 7
        %v686 = vsub.s32 %v531, %v685
        %v687 = vrot.slane %v661, %v686
        %v688 = vlaneseq
        %v689 = vshrl.u32 %v688, 7
        %v690 = vsub.s32 %v531, %v689
        %v691 = vrot.slane %v664, %v690
        %v692 = vlaneseq
        %v693 = vshrl.u32 %v692, 7
        %v694 = vsub.s32 %v531, %v693
        %v695 = vrot.slane %v667, %v694
        %v696 = vlaneseq
        %v697 = vshrl.u32 %v696, 7
        %v698 = vsub.s32 %v531, %v697
        %v699 = vrot.slane %v670, %v698
        %v700 = vlaneseq
        %v701 = vshrl.u32 %v700, 7
        %v702 = vsub.s32 %v531, %v701
        %v703 = vrot.slane %v673, %v702
        %v704 = vlaneseq
        %v705 = vshrl.u32 %v704, 7
        %v706 = vsub.s32 %v531, %v705
        %v707 = vrot.slane %v676, %v706
        %v708 = vlaneseq
        %v709 = vshrl.u32 %v708, 7
        %v710 = vsub.s32 %v531, %v709
        %v711 = vrot.slane %v679, %v710
        %v712 = vsel %vm564, %v687, %v683
        %v713 = vsel %vm566, %v691, %v712
        %v714 = vsel %vm568, %v695, %v713
        %v715 = vsel %vm570, %v699, %v714
        %v716 = vsel %vm572, %v703, %v715
        %v717 = vsel %vm574, %v707, %v716
        %v718 = vsel %vm576, %v711, %v717
        %v720 = vsel %vm579, %v718, 0.0
        %721 = vadd.xlane.f32.xlu0 %v720
        %v722 = vpop.xlane.xlu0 %721
        %v724 = vlaneseq
        %v725 = vshrl.u32 %v724, 7
        %v726 = vsub.s32 0, %v725
        %v727 = vrot.slane %v722, %v726
        %v728 = vlaneseq
        %v729 = vshrl.u32 %v728, 7
        %v730 = vsub.s32 1, %v729
        %v731 = vrot.slane %v722, %v730
        %v732 = vlaneseq
        %v733 = vshrl.u32 %v732, 7
        %v734 = vsub.s32 2, %v733
        %v735 = vrot.slane %v722, %v734
        %v736 = vlaneseq
        %v737 = vshrl.u32 %v736, 7
        %v738 = vsub.s32 3, %v737
        %v739 = vrot.slane %v722, %v738
        %v740 = vlaneseq
        %v741 = vshrl.u32 %v740, 7
        %v742 = vsub.s32 4, %v741
        %v743 = vrot.slane %v722, %v742
        %v744 = vlaneseq
        %v745 = vshrl.u32 %v744, 7
        %v746 = vsub.s32 5, %v745
        %v747 = vrot.slane %v722, %v746
        %v748 = vlaneseq
        %v749 = vshrl.u32 %v748, 7
        %v750 = vsub.s32 6, %v749
        %v751 = vrot.slane %v722, %v750
        %v752 = vlaneseq
        %v753 = vshrl.u32 %v752, 7
        %v754 = vsub.s32 7, %v753
        %v755 = vrot.slane %v722, %v754
        %v764 = vrcp.pop %v727
        %v765 = vmul.f32 %v633, %v764
        %v766 = vrcp.pop %v731
        %v767 = vmul.f32 %v635, %v766
        %v768 = vrcp.pop %v735
        %v769 = vmul.f32 %v637, %v768
        %v770 = vrcp.pop %v739
        %v771 = vmul.f32 %v639, %v770
        %v772 = vrcp.pop %v743
        %v773 = vmul.f32 %v641, %v772
        %v774 = vrcp.pop %v747
        %v775 = vmul.f32 %v643, %v774
        %v776 = vrcp.pop %v751
        %v777 = vmul.f32 %v645, %v776
        %v778 = vrcp.pop %v755
        %v779 = vmul.f32 %v647, %v778
        %788 = vset.pattern.permute.xlu0 0
        %789 = vperm.xlu0 %788, %v765
        %v790 = vpop.permute.xlu0 %789
        %791 = vset.pattern.permute.xlu0 0
        %792 = vperm.xlu0 %791, %v767
        %v793 = vpop.permute.xlu0 %792
        %794 = vset.pattern.permute.xlu0 0
        %795 = vperm.xlu0 %794, %v769
        %v796 = vpop.permute.xlu0 %795
        %797 = vset.pattern.permute.xlu0 0
        %798 = vperm.xlu0 %797, %v771
        %v799 = vpop.permute.xlu0 %798
        %800 = vset.pattern.permute.xlu0 0
        %801 = vperm.xlu0 %800, %v773
        %v802 = vpop.permute.xlu0 %801
        %803 = vset.pattern.permute.xlu0 0
        %804 = vperm.xlu0 %803, %v775
        %v805 = vpop.permute.xlu0 %804
        %806 = vset.pattern.permute.xlu0 0
        %807 = vperm.xlu0 %806, %v777
        %v808 = vpop.permute.xlu0 %807
        %809 = vset.pattern.permute.xlu0 0
        %810 = vperm.xlu0 %809, %v779
        %v811 = vpop.permute.xlu0 %810
        %v812 = vlaneseq
        %v813 = vshrl.u32 %v812, 7
        %v814 = vsub.s32 %v531, %v813
        %v815 = vrot.slane %v790, %v814
        %v816 = vlaneseq
        %v817 = vshrl.u32 %v816, 7
        %v818 = vsub.s32 %v531, %v817
        %v819 = vrot.slane %v793, %v818
        %v820 = vlaneseq
        %v821 = vshrl.u32 %v820, 7
        %v822 = vsub.s32 %v531, %v821
        %v823 = vrot.slane %v796, %v822
        %v824 = vlaneseq
        %v825 = vshrl.u32 %v824, 7
        %v826 = vsub.s32 %v531, %v825
        %v827 = vrot.slane %v799, %v826
        %v828 = vlaneseq
        %v829 = vshrl.u32 %v828, 7
        %v830 = vsub.s32 %v531, %v829
        %v831 = vrot.slane %v802, %v830
        %v832 = vlaneseq
        %v833 = vshrl.u32 %v832, 7
        %v834 = vsub.s32 %v531, %v833
        %v835 = vrot.slane %v805, %v834
        %v836 = vlaneseq
        %v837 = vshrl.u32 %v836, 7
        %v838 = vsub.s32 %v531, %v837
        %v839 = vrot.slane %v808, %v838
        %v840 = vlaneseq
        %v841 = vshrl.u32 %v840, 7
        %v842 = vsub.s32 %v531, %v841
        %v843 = vrot.slane %v811, %v842
        %v844 = vsel %vm564, %v819, %v815
        %v845 = vsel %vm566, %v823, %v844
        %v846 = vsel %vm568, %v827, %v845
        %v847 = vsel %vm570, %v831, %v846
        %v848 = vsel %vm572, %v835, %v847
        %v849 = vsel %vm574, %v839, %v848
        %v850 = vsel %vm576, %v843, %v849
        %852 = vst.msk [vmem:[%s277] sm:$0xff] %vm579, %v850
        %p853 = scmp.lt.s32.totalorder %s21, 1
        %s854 = scalar_select %p853, %s21, 1
        %s855 = smul.addr %s854, 8
        %s856 = scalar_lea.vmem %s4, %s855
        // Predicated region
        $region49: #{tpu_custom_call.1} parent=35 // pred_check
          %p857 = pneg %p133
        $region50: #{tpu_custom_call.1} parent=35 // pred_check_branch
          %859 = sbr.rel (%p857) target = $region52
        $region51: #{tpu_custom_call.1} parent=35 // pred_region
          _
        $region52: #{tpu_custom_call.1} parent=35 // pred_fallthru
          _
      $region36: #{tpu_custom_call.1} parent=5 // pred_fallthru
        _
      %p860 = scmp.le.s32.totalorder 2, %s16
      // Predicated region
      $region53: #{tpu_custom_call.1} parent=5 // pred_check
        %p861 = pneg %p860
      $region54: #{tpu_custom_call.1} parent=5 // pred_check_branch
        %863 = sbr.rel (%p861) target = $region56
      $region55: #{tpu_custom_call.1} parent=5 // pred_region
        %s864 = ssub.s32 %s16, 2
        // Predicated region
        $region57: #{tpu_custom_call.1} parent=55 // pred_check
          %p865 = pneg %p139
        $region58: #{tpu_custom_call.1} parent=55 // pred_check_branch
          %867 = sbr.rel (%p865) target = $region60
        $region59: #{tpu_custom_call.1} parent=55 // pred_region
          %p868 = scmp.lt.s32.totalorder %s22, 1
          %s869 = scalar_select %p868, %s22, 1
          %s870 = smul.addr %s869, 8
          %s871 = scalar_lea.vmem %s4, %s870
        $region60: #{tpu_custom_call.1} parent=55 // pred_fallthru
          _
      $region56: #{tpu_custom_call.1} parent=5 // pred_fallthru
        _
    $region6: #{tpu_custom_call.1} parent=1 // loop_footer
      %s20 = sadd.s32 1, %s16
    $region7: #{tpu_custom_call.1} parent=1 // loop_footer_branch
      %15 = sbr.rel target = $region3
    $region8: #{tpu_custom_call.1} parent=1 // loop_exit
      _
    %872 = vsyncpa [#allocation3], 1
    %s873 = scalar_lea.sflag [#allocation3], 1
    %874 = vsyncpa %s873, 1
    %875 = vsyncpa [#allocation5], 1
    %s876 = scalar_lea.sflag [#allocation5], 1
    %877 = vsyncpa %s876, 1

</llo_original>
